<compile_context>
chip_gen: v7x
topology: tpu7x:2x2x1
jax: 0.10.0
libtpu: 0.0.40
codegen_flags: <defaults>
</compile_context>

<pallas_src>
import functools

import jax
import jax.numpy as jnp
from jax.experimental import pallas as pl
from jax.experimental.pallas import tpu as pltpu

LANE = 128
SUBLANE = 8


def _round_up(v, m):
    return ((v + m - 1) // m) * m


@functools.lru_cache(maxsize=1)
def _chip_params():
    """Per-generation (tm_max, num_tensorcores). Conservative fallback = v5e/v6e."""
    try:
        kind = jax.devices()[0].device_kind.lower()
    except Exception:  # pragma: no cover - defensive
        kind = ""
    if ("v7" in kind) or ("7x" in kind):
        # v7x: ~3.2 TB/s per TC makes the ~0.35us per-grid-step overhead a
        # 30-40% tax at tm=1024 -> tm=4096.  3 inputs x 3 buffers x 2 MiB =
        # 18 MiB, comfortably inside the 32 MiB default scoped VMEM.
        # Two TensorCores -> split the row range across them.
        return 4096, 2
    # v5e / v6e: single TensorCore. tm=2048 keeps 3 inputs x 3 buffers x 1 MiB
    # = 9 MiB under the 16 MiB (v5e) / 32 MiB (v6e) default scoped VMEM.
    return 2048, 1


def _make_kernel(tm, rows, tiles_per_slice, mode):
    """Streaming per-(sublane, lane) partial-sum reduction kernel.

    mode == "proj": refs = (old, new, orig) -> accumulators (dot(y,x), dot(x,x))
    mode == "dot" : refs = (a, b)           -> accumulator  (dot(a,b),)
    """
    groups = tm // SUBLANE

    def _products(refs, valid):
        if mode == "proj":
            old_ref, new_ref, orig_ref = refs
            orig = orig_ref[...].astype(jnp.float32)
            x = old_ref[...].astype(jnp.float32) - orig   # old_attack_mid - original_mid
            y = new_ref[...].astype(jnp.float32) - orig   # new_mid        - original_mid
            if valid is not None:
                x = jnp.where(valid, x, 0.0)
                y = jnp.where(valid, y, 0.0)
            return (y * x, x * x)
        else:  # "dot"
            a_ref, b_ref = refs
            p = a_ref[...].astype(jnp.float32) * b_ref[...].astype(jnp.float32)
            if valid is not None:
                p = jnp.where(valid, p, 0.0)
            return (p,)

    def kernel(*args):
        refs, out_ref = args[:-1], args[-1]
        c = pl.program_id(0)   # slice index ("parallel" -> megacore on v7x)
        i = pl.program_id(1)   # reduction step ("arbitrary")

        # Zero the resident accumulator block at the start of each slice.
        @pl.when(i == 0)
        def _():
            out_ref[...] = jnp.zeros_like(out_ref)

        row0 = (c * tiles_per_slice + i) * tm

        def _accumulate(valid):
            for k, p in enumerate(_products(refs, valid)):
                # Grouping whole (8,128) vregs: the axis-0 sum is pure VALU adds
                # (no per-step cross-lane XLU reduce).
                out_ref[0, k] += p.reshape(groups, SUBLANE, LANE).sum(axis=0)

        # Interior full tiles skip the row mask entirely (saves ~2 VALU
        # ops/element on the hot path; matters on v7x / bf16 inputs).
        @pl.when(row0 + tm <= rows)
        def _():
            _accumulate(None)

        # Tail tile of each slice and clamped redundant steps of the last
        # slice: zero out rows past the end of the array.
        @pl.when(row0 + tm > rows)
        def _():
            local_row = jax.lax.broadcasted_iota(jnp.int32, (tm, 1), 0)
            _accumulate((row0 + local_row) < rows)

    return kernel


def _stream_partials(arrays, *, mode, n_acc, tm_max, num_tc):
    """Run the streaming reduction over lane-dense (rows, 128) slabs.

    Returns float32 partial sums of shape (num_slices, n_acc, 8, 128).
    """
    rows = arrays[0].shape[0]

    # Packed-sublane multiple for the narrowest streamed dtype
    # (8 for f32, 16 for bf16, 32 for int8/fp8) -> full-rate packed loads.
    pack = SUBLANE
    for a in arrays:
        pack = max(pack, SUBLANE * max(1, 4 // jnp.dtype(a.dtype).itemsize))

    tm = _round_up(min(tm_max, _round_up(rows, pack)), pack)
    total_tiles = pl.cdiv(rows, tm)

    # Split the row range across both TensorCores only when the chip has two
    # (v7x); single-TC chips skip the redundant clamped tile + extra writeback.
    num_slices = 2 if (num_tc >= 2 and total_tiles >= 2) else 1
    tiles_per_slice = pl.cdiv(total_tiles, num_slices)

    def in_map(c, i):
        # Clamp the (possibly) redundant trailing steps of the last slice so
        # they stay in bounds; their contribution is zeroed by the in-kernel
        # row mask.
        return (jnp.minimum(c * tiles_per_slice + i, total_tiles - 1), 0)

    if tiles_per_slice >= 3:
        # Triple-buffer the inputs to hide the DMA-issue/step-transition gap
        # (+50% input VMEM; still inside every generation's default limit).
        try:
            in_spec = pl.BlockSpec((tm, LANE), in_map, pipeline_mode=pl.Buffered(3))
        except Exception:  # older jax without pipeline_mode: fall back to 2 buffers
            in_spec = pl.BlockSpec((tm, LANE), in_map)
    else:
        in_spec = pl.BlockSpec((tm, LANE), in_map)

    out_spec = pl.BlockSpec((1, n_acc, SUBLANE, LANE), lambda c, i: (c, 0, 0, 0))

    return pl.pallas_call(
        _make_kernel(tm, rows, tiles_per_slice, mode),
        out_shape=jax.ShapeDtypeStruct((num_slices, n_acc, SUBLANE, LANE), jnp.float32),
        grid_spec=pltpu.PrefetchScalarGridSpec(
            num_scalar_prefetch=0,
            grid=(num_slices, tiles_per_slice),
            in_specs=[in_spec] * len(arrays),
            out_specs=out_spec,
        ),
        compiler_params=pltpu.CompilerParams(
            dimension_semantics=("parallel", "arbitrary")),
    )(*arrays)


@functools.partial(jax.jit, static_argnames=("tm_max", "num_tc"))
def _ila_proj_loss_jit(old_attack_mid, new_mid, original_mid, *, tm_max, num_tc):
    assert old_attack_mid.shape == new_mid.shape == original_mid.shape
    n = old_attack_mid.size
    bulk = (n // LANE) * LANE          # lane-aligned bulk handled by the kernel
    rows = bulk // LANE

    # TODO(synk): the flatten below may insert one relayout copy per input for
    # source layouts whose minor dim is not lane-aligned (e.g. NCHW 16x16);
    # folding the flatten into the producer (or passing pre-flattened
    # activations) removes that copy entirely.
    old_f = old_attack_mid.reshape(-1)
    new_f = new_mid.reshape(-1)
    orig_f = original_mid.reshape(-1)

    num = jnp.float32(0.0)
    den = jnp.float32(0.0)

    if bulk < n:
        # <=127-element tail: tiny JAX dot instead of a full-array pad copy.
        xt = old_f[bulk:].astype(jnp.float32) - orig_f[bulk:].astype(jnp.float32)
        yt = new_f[bulk:].astype(jnp.float32) - orig_f[bulk:].astype(jnp.float32)
        num = num + jnp.dot(yt, xt)
        den = den + jnp.dot(xt, xt)

    if rows > 0:
        def slab(f):
            f = f[:bulk] if bulk < n else f
            return f.reshape(rows, LANE)          # lane-dense 2-D slab

        partials = _stream_partials(
            [slab(old_f), slab(new_f), slab(orig_f)],
            mode="proj", n_acc=2, tm_max=tm_max, num_tc=num_tc)
        num = num + jnp.sum(partials[:, 0])       # dot(y, x)
        den = den + jnp.sum(partials[:, 1])       # dot(x, x) == ||x||^2

    return jnp.reshape(num / den, (1, 1)).astype(jnp.float32)


def ila_proj_loss(old_attack_mid, new_mid, original_mid):
    """Pallas implementation of ILAProjLoss.forward. Returns a (1, 1) float32."""
    tm_max, num_tc = _chip_params()
    return _ila_proj_loss_jit(old_attack_mid, new_mid, original_mid,
                              tm_max=tm_max, num_tc=num_tc)


# -------- Cached-x fast path for the ILA attack loop ------------------------
# old_attack_mid and original_mid are constant across attack iterations, so
# x = old - orig, den = dot(x,x) and c = dot(orig,x) can be computed once; each
# iteration then streams only new_mid and x (2 arrays instead of 3) and
# num = dot(new, x) - c.

@jax.jit
def ila_precompute(old_attack_mid, original_mid):
    """One-time precompute: returns (x_f32, c = dot(orig, x), den = dot(x, x))."""
    x = old_attack_mid.astype(jnp.float32) - original_mid.astype(jnp.float32)
    xf = x.reshape(-1)
    den = jnp.dot(xf, xf)
    c = jnp.dot(original_mid.reshape(-1).astype(jnp.float32), xf)
    return x, c, den


@functools.partial(jax.jit, static_argnames=("tm_max", "num_tc"))
def _ila_cached_jit(new_mid, x, c, den, *, tm_max, num_tc):
    assert new_mid.shape == x.shape
    n = new_mid.size
    bulk = (n // LANE) * LANE
    rows = bulk // LANE

    nf = new_mid.reshape(-1)
    xf = x.reshape(-1)

    dot_nx = jnp.float32(0.0)
    if bulk < n:
        dot_nx = dot_nx + jnp.dot(nf[bulk:].astype(jnp.float32),
                                  xf[bulk:].astype(jnp.float32))
    if rows > 0:
        def slab(f):
            f = f[:bulk] if bulk < n else f
            return f.reshape(rows, LANE)

        partials = _stream_partials([slab(nf), slab(xf)],
                                    mode="dot", n_acc=1,
                                    tm_max=tm_max, num_tc=num_tc)
        dot_nx = dot_nx + jnp.sum(partials[:, 0])

    return jnp.reshape((dot_nx - c) / den, (1, 1)).astype(jnp.float32)


def ila_proj_loss_cached(new_mid, x, c, den):
    """Per-iteration ILA loss using the cached x / c / den (2 streamed arrays)."""
    tm_max, num_tc = _chip_params()
    return _ila_cached_jit(new_mid, x, c, den, tm_max=tm_max, num_tc=num_tc)


# -------- Reference ----------------------------------------------------------

def ila_proj_loss_ref(old_attack_mid, new_mid, original_mid):
    """Pure-JAX reference matching the PyTorch module exactly."""
    x = (old_attack_mid - original_mid).reshape(1, -1).astype(jnp.float32)
    y = (new_mid - original_mid).reshape(1, -1).astype(jnp.float32)
    x_norm = x / jnp.linalg.norm(x)
    return (y @ x_norm.T) / jnp.linalg.norm(x)


if __name__ == "__main__":
    key = jax.random.PRNGKey(0)
    k1, k2, k3 = jax.random.split(key, 3)

    # Mid-layer feature maps in NCHW: batch=2, channels=4, spatial=16x16.
    shape = (2, 4, 16, 16)
    old_attack_mid = jax.random.normal(k1, shape, dtype=jnp.float32)
    new_mid = jax.random.normal(k2, shape, dtype=jnp.float32)
    original_mid = jax.random.normal(k3, shape, dtype=jnp.float32)

    out = jax.block_until_ready(ila_proj_loss(old_attack_mid, new_mid, original_mid))
    ref = ila_proj_loss_ref(old_attack_mid, new_mid, original_mid)
    assert out.shape == (1, 1), out.shape
    assert jnp.allclose(out, ref, rtol=1e-5, atol=1e-5), (out, ref)

    # Cached-x fast path (old_attack_mid / original_mid constant per attack).
    x_c, c_c, den_c = ila_precompute(old_attack_mid, original_mid)
    out_cached = jax.block_until_ready(ila_proj_loss_cached(new_mid, x_c, c_c, den_c))
    assert jnp.allclose(out_cached, ref, rtol=1e-4, atol=1e-4), (out_cached, ref)

    # Exercise multi-tile / slice-split / masked-overhang-tile paths by forcing
    # a tiny row tile: rows=57 -> 8 tiles of 8 rows, 2 slices, last tile masked.
    shape2 = (3, 19, 128)
    a2 = jax.random.normal(k1, shape2, dtype=jnp.float32)
    b2 = jax.random.normal(k2, shape2, dtype=jnp.float32)
    o2 = jax.random.normal(k3, shape2, dtype=jnp.float32)
    out2 = jax.block_until_ready(_ila_proj_loss_jit(a2, b2, o2, tm_max=8, num_tc=2))
    ref2 = ila_proj_loss_ref(a2, b2, o2)
    assert jnp.allclose(out2, ref2, rtol=1e-5, atol=1e-5), (out2, ref2)

    # Lane-unaligned element count (n % 128 != 0): JAX tail dot + masked tile.
    shape3 = (2, 3, 5, 7)
    a3 = jax.random.normal(k1, shape3, dtype=jnp.float32)
    b3 = jax.random.normal(k2, shape3, dtype=jnp.float32)
    o3 = jax.random.normal(k3, shape3, dtype=jnp.float32)
    out3 = jax.block_until_ready(ila_proj_loss(a3, b3, o3))
    ref3 = ila_proj_loss_ref(a3, b3, o3)
    assert jnp.allclose(out3, ref3, rtol=1e-5, atol=1e-5), (out3, ref3)

    # Fewer than 128 elements: pure-JAX fallback path.
    shape4 = (3, 5, 5)
    a4 = jax.random.normal(k1, shape4, dtype=jnp.float32)
    b4 = jax.random.normal(k2, shape4, dtype=jnp.float32)
    o4 = jax.random.normal(k3, shape4, dtype=jnp.float32)
    out4 = jax.block_until_ready(ila_proj_loss(a4, b4, o4))
    ref4 = ila_proj_loss_ref(a4, b4, o4)
    assert jnp.allclose(out4, ref4, rtol=1e-5, atol=1e-5), (out4, ref4)

    print("KERNEL_OK")
</pallas_src>

<mosaic_0001>
module attributes {stable_mosaic.version = 11 : i64} {
  func.func @kernel(%arg0: i32, %arg1: i32, %arg2: memref<16x128xf32, #tpu.memory_space<vmem>>, %arg3: memref<16x128xf32, #tpu.memory_space<vmem>>, %arg4: memref<16x128xf32, #tpu.memory_space<vmem>>, %arg5: memref<1x2x8x128xf32, #tpu.memory_space<vmem>>) attributes {dimension_semantics = [#tpu.dimension_semantics<parallel>, #tpu.dimension_semantics<arbitrary>], iteration_bounds = array<i64: 1, 1>, scalar_prefetch = 0 : i64, scratch_operands = 0 : i64, tpu.core_type = #tpu.core_type<tc>, window_params = [{transform_indices = @transform_0, window_bounds = array<i64: 16, 128>}, {transform_indices = @transform_1, window_bounds = array<i64: 16, 128>}, {transform_indices = @transform_2, window_bounds = array<i64: 16, 128>}, {transform_indices = @transform_3, window_bounds = array<i64: 1, 2, 8, 128>}]} {
    %c0_i32 = arith.constant 0 : i32
    %0 = arith.cmpi eq, %arg1, %c0_i32 : i32
    %1 = arith.extui %0 : i1 to i32
    %c0_i32_0 = arith.constant 0 : i32
    %2 = arith.cmpi ne, %1, %c0_i32_0 : i32
    scf.if %2 {
      %cst = arith.constant 0.000000e+00 : f32
      %14 = vector.broadcast %cst : f32 to vector<1x2x8x128xf32>
      %c0 = arith.constant 0 : index
      %c0_7 = arith.constant 0 : index
      %c0_8 = arith.constant 0 : index
      %c0_9 = arith.constant 0 : index
      %15 = vector.load %arg5[%c0, %c0_7, %c0_8, %c0_9] : memref<1x2x8x128xf32, #tpu.memory_space<vmem>>, vector<1x2x8x128xf32>
      tpu.vector_store %arg5[%c0, %c0_7, %c0_8, %c0_9], %14 {strides = array<i32>} : memref<1x2x8x128xf32, #tpu.memory_space<vmem>>, vector<1x2x8x128xf32>,
    } else {
    }
    %c1_i32 = arith.constant 1 : i32
    %3 = arith.muli %arg0, %c1_i32 : i32
    %4 = arith.addi %3, %arg1 : i32
    %c16_i32 = arith.constant 16 : i32
    %5 = arith.muli %4, %c16_i32 : i32
    %c16_i32_1 = arith.constant 16 : i32
    %6 = arith.addi %5, %c16_i32_1 : i32
    %c16_i32_2 = arith.constant 16 : i32
    %7 = arith.cmpi sle, %6, %c16_i32_2 : i32
    %8 = arith.extui %7 : i1 to i32
    %c0_i32_3 = arith.constant 0 : i32
    %9 = arith.cmpi ne, %8, %c0_i32_3 : i32
    scf.if %9 {
      %c0 = arith.constant 0 : index
      %c0_7 = arith.constant 0 : index
      %14 = vector.load %arg4[%c0, %c0_7] : memref<16x128xf32, #tpu.memory_space<vmem>>, vector<16x128xf32>
      %c0_8 = arith.constant 0 : index
      %c0_9 = arith.constant 0 : index
      %15 = vector.load %arg2[%c0_8, %c0_9] : memref<16x128xf32, #tpu.memory_space<vmem>>, vector<16x128xf32>
      %16 = arith.subf %15, %14 : vector<16x128xf32>
      %c0_10 = arith.constant 0 : index
      %c0_11 = arith.constant 0 : index
      %17 = vector.load %arg3[%c0_10, %c0_11] : memref<16x128xf32, #tpu.memory_space<vmem>>, vector<16x128xf32>
      %18 = arith.subf %17, %14 : vector<16x128xf32>
      %19 = arith.mulf %18, %16 : vector<16x128xf32>
      %20 = arith.mulf %16, %16 : vector<16x128xf32>
      %c0_12 = arith.constant 0 : index
      %c0_13 = arith.constant 0 : index
      %c0_14 = arith.constant 0 : index
      %c0_15 = arith.constant 0 : index
      %21 = vector.load %arg5[%c0_12, %c0_13, %c0_14, %c0_15] : memref<1x2x8x128xf32, #tpu.memory_space<vmem>>, vector<1x1x8x128xf32>
      %22 = vector.shape_cast %21 : vector<1x1x8x128xf32> to vector<8x128xf32>
      %23 = vector.shape_cast %19 : vector<16x128xf32> to vector<2x8x128xf32>
      %cst = arith.constant dense<0.000000e+00> : vector<8x128xf32>
      %24 = vector.multi_reduction <add>, %23, %cst [0] : vector<2x8x128xf32> to vector<8x128xf32>
      %25 = arith.addf %22, %24 : vector<8x128xf32>
      %c0_16 = arith.constant 0 : index
      %c0_17 = arith.constant 0 : index
      %c0_18 = arith.constant 0 : index
      %c0_19 = arith.constant 0 : index
      %26 = vector.load %arg5[%c0_16, %c0_17, %c0_18, %c0_19] : memref<1x2x8x128xf32, #tpu.memory_space<vmem>>, vector<1x1x8x128xf32>
      %27 = vector.shape_cast %26 : vector<1x1x8x128xf32> to vector<8x128xf32>
      %28 = vector.shape_cast %25 : vector<8x128xf32> to vector<1x1x8x128xf32>
      tpu.vector_store %arg5[%c0_16, %c0_17, %c0_18, %c0_19], %28 {strides = array<i32>} : memref<1x2x8x128xf32, #tpu.memory_space<vmem>>, vector<1x1x8x128xf32>,
      %c0_20 = arith.constant 0 : index
      %c1 = arith.constant 1 : index
      %c0_21 = arith.constant 0 : index
      %c0_22 = arith.constant 0 : index
      %29 = vector.load %arg5[%c0_20, %c1, %c0_21, %c0_22] : memref<1x2x8x128xf32, #tpu.memory_space<vmem>>, vector<1x1x8x128xf32>
      %30 = vector.shape_cast %29 : vector<1x1x8x128xf32> to vector<8x128xf32>
      %31 = vector.shape_cast %20 : vector<16x128xf32> to vector<2x8x128xf32>
      %cst_23 = arith.constant dense<0.000000e+00> : vector<8x128xf32>
      %32 = vector.multi_reduction <add>, %31, %cst_23 [0] : vector<2x8x128xf32> to vector<8x128xf32>
      %33 = arith.addf %30, %32 : vector<8x128xf32>
      %c0_24 = arith.constant 0 : index
      %c1_25 = arith.constant 1 : index
      %c0_26 = arith.constant 0 : index
      %c0_27 = arith.constant 0 : index
      %34 = vector.load %arg5[%c0_24, %c1_25, %c0_26, %c0_27] : memref<1x2x8x128xf32, #tpu.memory_space<vmem>>, vector<1x1x8x128xf32>
      %35 = vector.shape_cast %34 : vector<1x1x8x128xf32> to vector<8x128xf32>
      %36 = vector.shape_cast %33 : vector<8x128xf32> to vector<1x1x8x128xf32>
      tpu.vector_store %arg5[%c0_24, %c1_25, %c0_26, %c0_27], %36 {strides = array<i32>} : memref<1x2x8x128xf32, #tpu.memory_space<vmem>>, vector<1x1x8x128xf32>,
    } else {
    }
    %c16_i32_4 = arith.constant 16 : i32
    %10 = arith.addi %5, %c16_i32_4 : i32
    %c16_i32_5 = arith.constant 16 : i32
    %11 = arith.cmpi sgt, %10, %c16_i32_5 : i32
    %12 = arith.extui %11 : i1 to i32
    %c0_i32_6 = arith.constant 0 : i32
    %13 = arith.cmpi ne, %12, %c0_i32_6 : i32
    scf.if %13 {
      %14 = tpu.iota {dimensions = array<i32: 0>} : vector<16x1xi32>
      %15 = vector.broadcast %5 : i32 to vector<16x1xi32>
      %16 = arith.addi %15, %14 : vector<16x1xi32>
      %c16_i32_7 = arith.constant 16 : i32
      %17 = vector.broadcast %c16_i32_7 : i32 to vector<16x1xi32>
      %18 = arith.cmpi slt, %16, %17 : vector<16x1xi32>
      %c0 = arith.constant 0 : index
      %c0_8 = arith.constant 0 : index
      %19 = vector.load %arg4[%c0, %c0_8] : memref<16x128xf32, #tpu.memory_space<vmem>>, vector<16x128xf32>
      %c0_9 = arith.constant 0 : index
      %c0_10 = arith.constant 0 : index
      %20 = vector.load %arg2[%c0_9, %c0_10] : memref<16x128xf32, #tpu.memory_space<vmem>>, vector<16x128xf32>
      %21 = arith.subf %20, %19 : vector<16x128xf32>
      %c0_11 = arith.constant 0 : index
      %c0_12 = arith.constant 0 : index
      %22 = vector.load %arg3[%c0_11, %c0_12] : memref<16x128xf32, #tpu.memory_space<vmem>>, vector<16x128xf32>
      %23 = arith.subf %22, %19 : vector<16x128xf32>
      %cst = arith.constant 0.000000e+00 : f32
      %24 = vector.shape_cast %18 : vector<16x1xi1> to vector<16x1xi1>
      %25 = vector.broadcast %24 : vector<16x1xi1> to vector<16x128xi1>
      %26 = vector.broadcast %cst : f32 to vector<16x128xf32>
      %27 = arith.select %25, %21, %26 : vector<16x128xi1>, vector<16x128xf32>
      %cst_13 = arith.constant 0.000000e+00 : f32
      %28 = vector.shape_cast %18 : vector<16x1xi1> to vector<16x1xi1>
      %29 = vector.broadcast %28 : vector<16x1xi1> to vector<16x128xi1>
      %30 = vector.broadcast %cst_13 : f32 to vector<16x128xf32>
      %31 = arith.select %29, %23, %30 : vector<16x128xi1>, vector<16x128xf32>
      %32 = arith.mulf %31, %27 : vector<16x128xf32>
      %33 = arith.mulf %27, %27 : vector<16x128xf32>
      %c0_14 = arith.constant 0 : index
      %c0_15 = arith.constant 0 : index
      %c0_16 = arith.constant 0 : index
      %c0_17 = arith.constant 0 : index
      %34 = vector.load %arg5[%c0_14, %c0_15, %c0_16, %c0_17] : memref<1x2x8x128xf32, #tpu.memory_space<vmem>>, vector<1x1x8x128xf32>
      %35 = vector.shape_cast %34 : vector<1x1x8x128xf32> to vector<8x128xf32>
      %36 = vector.shape_cast %32 : vector<16x128xf32> to vector<2x8x128xf32>
      %cst_18 = arith.constant dense<0.000000e+00> : vector<8x128xf32>
      %37 = vector.multi_reduction <add>, %36, %cst_18 [0] : vector<2x8x128xf32> to vector<8x128xf32>
      %38 = arith.addf %35, %37 : vector<8x128xf32>
      %c0_19 = arith.constant 0 : index
      %c0_20 = arith.constant 0 : index
      %c0_21 = arith.constant 0 : index
      %c0_22 = arith.constant 0 : index
      %39 = vector.load %arg5[%c0_19, %c0_20, %c0_21, %c0_22] : memref<1x2x8x128xf32, #tpu.memory_space<vmem>>, vector<1x1x8x128xf32>
      %40 = vector.shape_cast %39 : vector<1x1x8x128xf32> to vector<8x128xf32>
      %41 = vector.shape_cast %38 : vector<8x128xf32> to vector<1x1x8x128xf32>
      tpu.vector_store %arg5[%c0_19, %c0_20, %c0_21, %c0_22], %41 {strides = array<i32>} : memref<1x2x8x128xf32, #tpu.memory_space<vmem>>, vector<1x1x8x128xf32>,
      %c0_23 = arith.constant 0 : index
      %c1 = arith.constant 1 : index
      %c0_24 = arith.constant 0 : index
      %c0_25 = arith.constant 0 : index
      %42 = vector.load %arg5[%c0_23, %c1, %c0_24, %c0_25] : memref<1x2x8x128xf32, #tpu.memory_space<vmem>>, vector<1x1x8x128xf32>
      %43 = vector.shape_cast %42 : vector<1x1x8x128xf32> to vector<8x128xf32>
      %44 = vector.shape_cast %33 : vector<16x128xf32> to vector<2x8x128xf32>
      %cst_26 = arith.constant dense<0.000000e+00> : vector<8x128xf32>
      %45 = vector.multi_reduction <add>, %44, %cst_26 [0] : vector<2x8x128xf32> to vector<8x128xf32>
      %46 = arith.addf %43, %45 : vector<8x128xf32>
      %c0_27 = arith.constant 0 : index
      %c1_28 = arith.constant 1 : index
      %c0_29 = arith.constant 0 : index
      %c0_30 = arith.constant 0 : index
      %47 = vector.load %arg5[%c0_27, %c1_28, %c0_29, %c0_30] : memref<1x2x8x128xf32, #tpu.memory_space<vmem>>, vector<1x1x8x128xf32>
      %48 = vector.shape_cast %47 : vector<1x1x8x128xf32> to vector<8x128xf32>
      %49 = vector.shape_cast %46 : vector<8x128xf32> to vector<1x1x8x128xf32>
      tpu.vector_store %arg5[%c0_27, %c1_28, %c0_29, %c0_30], %49 {strides = array<i32>} : memref<1x2x8x128xf32, #tpu.memory_space<vmem>>, vector<1x1x8x128xf32>,
    } else {
    }
    return
  }
  func.func @transform_0(%arg0: i32, %arg1: i32) -> (i32, i32) {
    %c1_i32 = arith.constant 1 : i32
    %0 = arith.muli %arg0, %c1_i32 : i32
    %1 = arith.addi %0, %arg1 : i32
    %c0_i32 = arith.constant 0 : i32
    %2 = arith.minsi %1, %c0_i32 : i32
    %c0_i32_0 = arith.constant 0 : i32
    %c0_i32_1 = arith.constant 0 : i32
    return %2, %c0_i32_0 : i32, i32
  }
  func.func @transform_1(%arg0: i32, %arg1: i32) -> (i32, i32) {
    %c1_i32 = arith.constant 1 : i32
    %0 = arith.muli %arg0, %c1_i32 : i32
    %1 = arith.addi %0, %arg1 : i32
    %c0_i32 = arith.constant 0 : i32
    %2 = arith.minsi %1, %c0_i32 : i32
    %c0_i32_0 = arith.constant 0 : i32
    %c0_i32_1 = arith.constant 0 : i32
    return %2, %c0_i32_0 : i32, i32
  }
  func.func @transform_2(%arg0: i32, %arg1: i32) -> (i32, i32) {
    %c1_i32 = arith.constant 1 : i32
    %0 = arith.muli %arg0, %c1_i32 : i32
    %1 = arith.addi %0, %arg1 : i32
    %c0_i32 = arith.constant 0 : i32
    %2 = arith.minsi %1, %c0_i32 : i32
    %c0_i32_0 = arith.constant 0 : i32
    %c0_i32_1 = arith.constant 0 : i32
    return %2, %c0_i32_0 : i32, i32
  }
  func.func @transform_3(%arg0: i32, %arg1: i32) -> (i32, i32, i32, i32) {
    %c0_i32 = arith.constant 0 : i32
    %c0_i32_0 = arith.constant 0 : i32
    %c0_i32_1 = arith.constant 0 : i32
    %c0_i32_2 = arith.constant 0 : i32
    return %arg0, %c0_i32, %c0_i32_0, %c0_i32_1 : i32, i32, i32, i32
  }
}

</mosaic_0001>

<llo_original>
// kernel: _ila_proj_loss_jit.1
$region0: #{_ila_proj_loss_jit.1}
  #allocation0 [shape = 'u32[]', space=smem, size = 0x4, offset = 0x4, fixed_abs, tag = 'smem constant byte address 0x4 - core index']
  #allocation1 [shape = 'u32[144,128]{1,0:T(1,128)}', space=vmem, size = 0x12000, scoped, tag = 'internal scratch']
  %s0 = inlined_call_operand.vmem [shape: f32[16,128], index: 0, kind: input, shape index: {}]
  %s1 = inlined_call_operand.vmem [shape: f32[16,128], index: 1, kind: input, shape index: {}]
  %s2 = inlined_call_operand.vmem [shape: f32[16,128], index: 2, kind: input, shape index: {}]
  %s3 = inlined_call_operand.vmem [shape: f32[1,2,8,128], index: 3, kind: output, shape index: {}]
  %s4 = sld [smem:[#allocation0]]
  $region34: #{_ila_proj_loss_jit.1} parent=0
    _
  %s6 = ssub.s32 1, %s4
  %s7 = scalar_select 0, %s6, %s4
  // Predicated region
  $region2: #{_ila_proj_loss_jit.1} parent=0 // pred_check
    _
  $region3: #{_ila_proj_loss_jit.1} parent=0 // pred_check_branch
    %9 = sbr.rel (0) target = $region5
  $region4: #{_ila_proj_loss_jit.1} parent=0 // pred_region
    %s10 = sadd.s32 0, 0
    %p11 = scmp.lt.s32.totalorder %s10, 0
    %s12 = scalar_select %p11, %s10, 0
    %s13 = smul.u32 2, %s12
    %p14 = scmp.lt.s32.totalorder %s13, 1
    %s15 = scalar_select %p14, %s13, 1
    %s16 = smul.addr %s15, 8
    %s17 = scalar_lea.vmem %s0, %s16
    %s18 = sadd.s32 0, 0
    %p19 = scmp.lt.s32.totalorder %s18, 0
    %s20 = scalar_select %p19, %s18, 0
    %s21 = smul.u32 2, %s20
  $region5: #{_ila_proj_loss_jit.1} parent=0 // pred_fallthru
    _
  // Predicated region
  $region6: #{_ila_proj_loss_jit.1} parent=0 // pred_check
    _
  $region7: #{_ila_proj_loss_jit.1} parent=0 // pred_check_branch
    %23 = sbr.rel (0) target = $region9
  $region8: #{_ila_proj_loss_jit.1} parent=0 // pred_region
    %s24 = sadd.s32 0, 0
    %p25 = scmp.lt.s32.totalorder %s24, 0
    %s26 = scalar_select %p25, %s24, 0
    %s27 = smul.u32 2, %s26
    %p28 = scmp.lt.s32.totalorder %s27, 1
    %s29 = scalar_select %p28, %s27, 1
    %s30 = smul.addr %s29, 8
    %s31 = scalar_lea.vmem %s1, %s30
    %s32 = sadd.s32 0, 0
    %p33 = scmp.lt.s32.totalorder %s32, 0
    %s34 = scalar_select %p33, %s32, 0
    %s35 = smul.u32 2, %s34
  $region9: #{_ila_proj_loss_jit.1} parent=0 // pred_fallthru
    _
  // Predicated region
  $region10: #{_ila_proj_loss_jit.1} parent=0 // pred_check
    _
  $region11: #{_ila_proj_loss_jit.1} parent=0 // pred_check_branch
    %37 = sbr.rel (0) target = $region13
  $region12: #{_ila_proj_loss_jit.1} parent=0 // pred_region
    %s38 = sadd.s32 0, 0
    %p39 = scmp.lt.s32.totalorder %s38, 0
    %s40 = scalar_select %p39, %s38, 0
    %s41 = smul.u32 2, %s40
    %p42 = scmp.lt.s32.totalorder %s41, 1
    %s43 = scalar_select %p42, %s41, 1
    %s44 = smul.addr %s43, 8
    %s45 = scalar_lea.vmem %s2, %s44
    %s46 = sadd.s32 0, 0
    %p47 = scmp.lt.s32.totalorder %s46, 0
    %s48 = scalar_select %p47, %s46, 0
    %s49 = smul.u32 2, %s48
  $region13: #{_ila_proj_loss_jit.1} parent=0 // pred_fallthru
    _
  %s50 = sadd.s32 0, 0
  %p51 = scmp.lt.s32.totalorder %s50, 0
  %s52 = scalar_select %p51, %s50, 0
  %s53 = smul.u32 2, %s52
  %p54 = scmp.lt.s32.totalorder %s53, 1
  %s55 = scalar_select %p54, %s53, 1
  %s56 = smul.addr %s55, 8
  %s57 = scalar_lea.vmem %s0, %s56
  %s58 = sadd.s32 0, 0
  %p59 = scmp.lt.s32.totalorder %s58, 0
  %s60 = scalar_select %p59, %s58, 0
  %s61 = smul.u32 2, %s60
  %p62 = scmp.lt.s32.totalorder %s61, 1
  %s63 = scalar_select %p62, %s61, 1
  %s64 = smul.addr %s63, 8
  %s65 = scalar_lea.vmem %s1, %s64
  %s66 = sadd.s32 0, 0
  %p67 = scmp.lt.s32.totalorder %s66, 0
  %s68 = scalar_select %p67, %s66, 0
  %s69 = smul.u32 2, %s68
  %p70 = scmp.lt.s32.totalorder %s69, 1
  %s71 = scalar_select %p70, %s69, 1
  %s72 = smul.addr %s71, 8
  %s73 = scalar_lea.vmem %s2, %s72
  %s74 = sadd.s32 0, 0
  %p75 = scmp.lt.s32.totalorder %s74, 0
  %s76 = scalar_select %p75, %s74, 0
  %s77 = smul.u32 2, %s76
  %p78 = scmp.lt.s32.totalorder %s77, 1
  %s79 = scalar_select %p78, %s77, 1
  %s80 = smul.addr %s79, 8
  %s81 = scalar_lea.vmem %s0, %s80
  %s82 = sadd.s32 0, 0
  %p83 = scmp.lt.s32.totalorder %s82, 0
  %s84 = scalar_select %p83, %s82, 0
  %s85 = smul.u32 2, %s84
  %s86 = sadd.s32 0, 0
  %p87 = scmp.lt.s32.totalorder %s86, 0
  %s88 = scalar_select %p87, %s86, 0
  %s89 = smul.u32 2, %s88
  %p90 = scmp.lt.s32.totalorder %s89, 1
  %s91 = scalar_select %p90, %s89, 1
  %s92 = smul.addr %s91, 8
  %s93 = scalar_lea.vmem %s1, %s92
  %s94 = sadd.s32 0, 0
  %p95 = scmp.lt.s32.totalorder %s94, 0
  %s96 = scalar_select %p95, %s94, 0
  %s97 = smul.u32 2, %s96
  %s98 = sadd.s32 0, 0
  %p99 = scmp.lt.s32.totalorder %s98, 0
  %s100 = scalar_select %p99, %s98, 0
  %s101 = smul.u32 2, %s100
  %p102 = scmp.lt.s32.totalorder %s101, 1
  %s103 = scalar_select %p102, %s101, 1
  %s104 = smul.addr %s103, 8
  %s105 = scalar_lea.vmem %s2, %s104
  %s106 = sadd.s32 0, 0
  %p107 = scmp.lt.s32.totalorder %s106, 0
  %s108 = scalar_select %p107, %s106, 0
  %s109 = smul.u32 2, %s108
  %p110 = scmp.eq.s32.totalorder 0, 0
  // Predicated region
  $region14: #{_ila_proj_loss_jit.1} parent=0 // pred_check
    %p111 = pneg %p110
  $region15: #{_ila_proj_loss_jit.1} parent=0 // pred_check_branch
    %113 = sbr.rel (%p111) target = $region17
  $region16: #{_ila_proj_loss_jit.1} parent=0 // pred_region
    %114 = vst [vmem:[%s3] sm:$0xff] 0.0
    %115 = vst [vmem:[%s3 + $0x8] sm:$0xff] 0.0
  $region17: #{_ila_proj_loss_jit.1} parent=0 // pred_fallthru
    _
  %s116 = sadd.s32 0, 0
  %s117 = smul.u32 %s116, 16
  %s118 = sadd.s32 %s117, 16
  %p119 = scmp.le.s32.totalorder %s118, 16
  // Predicated region
  $region18: #{_ila_proj_loss_jit.1} parent=0 // pred_check
    %p120 = pneg %p119
  $region19: #{_ila_proj_loss_jit.1} parent=0 // pred_check_branch
    %122 = sbr.rel (%p120) target = $region21
  $region20: #{_ila_proj_loss_jit.1} parent=0 // pred_region
    %v123 = vld [vmem:[%s105] sm:$0xff]
    %v124 = vld [vmem:[%s105 + $0x8] sm:$0xff]
    %v125 = vld [vmem:[%s81] sm:$0xff]
    %v126 = vld [vmem:[%s81 + $0x8] sm:$0xff]
    %v127 = vsub.f32 %v125, %v123
    %v128 = vsub.f32 %v126, %v124
    %v129 = vld [vmem:[%s93] sm:$0xff]
    %v130 = vld [vmem:[%s93 + $0x8] sm:$0xff]
    %v131 = vsub.f32 %v129, %v123
    %v132 = vsub.f32 %v130, %v124
    %v133 = vmul.f32 %v131, %v127
    %v134 = vmul.f32 %v132, %v128
    %v135 = vmul.f32 %v127, %v127
    %v136 = vmul.f32 %v128, %v128
    %v137 = vld [vmem:[%s3] sm:$0xff]
    %v138 = vadd.f32 %v133, %v134
    %v139 = vadd.f32 %v137, %v138
    %140 = vst [vmem:[%s3] sm:$0xff] %v139
    %s141 = scalar_lea.vmem %s3, 8
    %v142 = vld [vmem:[%s141] sm:$0xff]
    %v143 = vadd.f32 %v135, %v136
    %v144 = vadd.f32 %v142, %v143
    %145 = vst [vmem:[%s141] sm:$0xff] %v144
  $region21: #{_ila_proj_loss_jit.1} parent=0 // pred_fallthru
    _
  %p146 = scmp.gt.s32.totalorder %s118, 16
  // Predicated region
  $region22: #{_ila_proj_loss_jit.1} parent=0 // pred_check
    %p147 = pneg %p146
  $region23: #{_ila_proj_loss_jit.1} parent=0 // pred_check_branch
    %149 = sbr.rel (%p147) target = $region25
  $region24: #{_ila_proj_loss_jit.1} parent=0 // pred_region
    %v150 = vlaneseq
    %v151 = vshrl.u32 %v150, 7
    %v152 = vadd.s32 %v151, 8
    %v153 = vstv %s117
    %v154 = vadd.s32 %v153, %v151
    %v155 = vadd.s32 %v153, %v152
    %vm156 = vcmp.lt.s32.totalorder %v154, 16
    %vm157 = vcmp.lt.s32.totalorder %v155, 16
    %v158 = vld [vmem:[%s105] sm:$0xff]
    %v159 = vld [vmem:[%s105 + $0x8] sm:$0xff]
    %v160 = vld [vmem:[%s81] sm:$0xff]
    %v161 = vld [vmem:[%s81 + $0x8] sm:$0xff]
    %v162 = vsub.f32 %v160, %v158
    %v163 = vsub.f32 %v161, %v159
    %v164 = vld [vmem:[%s93] sm:$0xff]
    %v165 = vld [vmem:[%s93 + $0x8] sm:$0xff]
    %v166 = vsub.f32 %v164, %v158
    %v167 = vsub.f32 %v165, %v159
    %v168 = vsel %vm156, 1, 0
    %v169 = vsel %vm157, 1, 0
    %vm170 = vcmp.eq.s32.totalorder %v168, 1
    %vm171 = vcmp.eq.s32.totalorder %v169, 1
    %v172 = vsel %vm170, %v162, 0.0
    %v173 = vsel %vm171, %v163, 0.0
    %v174 = vsel %vm170, %v166, 0.0
    %v175 = vsel %vm171, %v167, 0.0
    %v176 = vmul.f32 %v174, %v172
    %v177 = vmul.f32 %v175, %v173
    %v178 = vmul.f32 %v172, %v172
    %v179 = vmul.f32 %v173, %v173
    %v180 = vld [vmem:[%s3] sm:$0xff]
    %v181 = vadd.f32 %v176, %v177
    %v182 = vadd.f32 %v180, %v181
    %183 = vst [vmem:[%s3] sm:$0xff] %v182
    %s184 = scalar_lea.vmem %s3, 8
    %v185 = vld [vmem:[%s184] sm:$0xff]
    %v186 = vadd.f32 %v178, %v179
    %v187 = vadd.f32 %v185, %v186
    %188 = vst [vmem:[%s184] sm:$0xff] %v187
  $region25: #{_ila_proj_loss_jit.1} parent=0 // pred_fallthru
    _
  // Predicated region
  $region26: #{_ila_proj_loss_jit.1} parent=0 // pred_check
    _
  $region27: #{_ila_proj_loss_jit.1} parent=0 // pred_check_branch
    %190 = sbr.rel (0) target = $region29
  $region28: #{_ila_proj_loss_jit.1} parent=0 // pred_region
    _
  $region29: #{_ila_proj_loss_jit.1} parent=0 // pred_fallthru
    _
  // Predicated region
  $region30: #{_ila_proj_loss_jit.1} parent=0 // pred_check
    _
  $region31: #{_ila_proj_loss_jit.1} parent=0 // pred_check_branch
    %192 = sbr.rel (0) target = $region33
  $region32: #{_ila_proj_loss_jit.1} parent=0 // pred_region
    _
  $region33: #{_ila_proj_loss_jit.1} parent=0 // pred_fallthru
    _

</llo_original>
